<compile_context>
chip_gen: v5e
topology: v5e:2x2
jax: 0.10.0
libtpu: 0.0.40
codegen_flags: <defaults>
</compile_context>

<pallas_src>
import functools

import jax
import jax.numpy as jnp
import numpy as np
from jax import lax
from jax.experimental import pallas as pl
from jax.experimental.pallas import tpu as pltpu

# ---- problem sizes (consistent with the module) ----
D = 32               # dim (channels)
G = 8                # num_groups (module default)
GS = D // G          # channels per group = 4
PACK = 128 // D      # rows packed per 128-lane slab = 4
LANES = PACK * D     # 128
TM = 16              # packed rows per grid block (multiple of 8 sublanes)
EPS = 1e-5           # PyTorch default for both GroupNorm and LayerNorm


# ---------------- Pallas kernel ----------------
def _norm_kernel(x_ref, p_ref, avg_g_ref, mgt_ref, avg_l_ref, mlt_ref, o_ref):
    x = x_ref[...]                       # (TM, 128)  4 original rows per packed row
    p = p_ref[...]                       # (4, 128)   tiled affine params
    gn_g, gn_b = p[0:1, :], p[1:2, :]
    ln_g, ln_b = p[2:3, :], p[3:4, :]

    avg_g = avg_g_ref[...]               # (128, 32)  lane -> 4-lane group, pre-divided by GS
    mgt = mgt_ref[...]                   # (32, 128)  broadcast group stat back to lanes
    avg_l = avg_l_ref[...]               # (128, 4)   lane -> 32-lane row segment, / D
    mlt = mlt_ref[...]                   # (4, 128)

    # --- GroupNorm(8 groups over 32 channels) == 32 groups of 4 lanes in packed layout ---
    mean_g = jnp.dot(x, avg_g, preferred_element_type=jnp.float32)        # (TM, 32)
    mean = jnp.dot(mean_g, mgt, preferred_element_type=jnp.float32)       # (TM, 128)
    xc = x - mean
    var_g = jnp.dot(xc * xc, avg_g, preferred_element_type=jnp.float32)   # biased var
    var = jnp.dot(var_g, mgt, preferred_element_type=jnp.float32)
    gn = xc * lax.rsqrt(var + EPS) * gn_g + gn_b

    # --- LayerNorm(32) == per-32-lane-segment norm in packed layout ---
    mean_s = jnp.dot(gn, avg_l, preferred_element_type=jnp.float32)       # (TM, 4)
    mean2 = jnp.dot(mean_s, mlt, preferred_element_type=jnp.float32)      # (TM, 128)
    gc = gn - mean2
    var_s = jnp.dot(gc * gc, avg_l, preferred_element_type=jnp.float32)
    var2 = jnp.dot(var_s, mlt, preferred_element_type=jnp.float32)
    o_ref[...] = gc * lax.rsqrt(var2 + EPS) * ln_g + ln_b


# ---------------- wrapper ----------------
@functools.partial(jax.jit, static_argnames=("tm",))
def normalization_block(x, gn_gamma, gn_beta, ln_gamma, ln_beta, *, tm=TM):
    n, d = x.shape
    assert d == D and n % (PACK * tm) == 0
    xp = x.reshape(n // PACK, LANES)                       # lane-dense packed layout

    # tiled affine params: lane l holds param[l % D]
    params = jnp.stack(
        [jnp.tile(gn_gamma, PACK), jnp.tile(gn_beta, PACK),
         jnp.tile(ln_gamma, PACK), jnp.tile(ln_beta, PACK)], axis=0)      # (4, 128)

    # precomputed membership / averaging matrices (hoisted out of the kernel)
    lane = np.arange(LANES)
    mg = (lane[:, None] // GS == np.arange(LANES // GS)[None, :]).astype(np.float32)  # (128,32)
    ml = (lane[:, None] // D == np.arange(PACK)[None, :]).astype(np.float32)          # (128,4)
    avg_g = jnp.asarray(mg / GS)
    mgt = jnp.asarray(mg.T)
    avg_l = jnp.asarray(ml / D)
    mlt = jnp.asarray(ml.T)

    grid = (xp.shape[0] // tm,)
    out = pl.pallas_call(
        _norm_kernel,
        grid=grid,
        in_specs=[
            pl.BlockSpec((tm, LANES), lambda i: (i, 0)),                 # x (tiled over rows)
            pl.BlockSpec((4, LANES), lambda i: (0, 0)),                  # params
            pl.BlockSpec((LANES, LANES // GS), lambda i: (0, 0)),        # avg_g
            pl.BlockSpec((LANES // GS, LANES), lambda i: (0, 0)),        # mgt
            pl.BlockSpec((LANES, PACK), lambda i: (0, 0)),               # avg_l
            pl.BlockSpec((PACK, LANES), lambda i: (0, 0)),               # mlt
        ],
        out_specs=pl.BlockSpec((tm, LANES), lambda i: (i, 0)),
        out_shape=jax.ShapeDtypeStruct(xp.shape, jnp.float32),
        compiler_params=pltpu.CompilerParams(dimension_semantics=("parallel",)),
    )(xp, params, avg_g, mgt, avg_l, mlt)
    return out.reshape(n, d)


# ---------------- pure-JAX reference (PyTorch semantics) ----------------
def _ref_forward(x, gn_gamma, gn_beta, ln_gamma, ln_beta):
    n, d = x.shape
    xg = x.reshape(n, G, GS)
    m = xg.mean(axis=-1, keepdims=True)
    v = ((xg - m) ** 2).mean(axis=-1, keepdims=True)           # biased, two-pass
    gn = ((xg - m) / jnp.sqrt(v + EPS)).reshape(n, d) * gn_gamma + gn_beta
    m2 = gn.mean(axis=-1, keepdims=True)
    v2 = ((gn - m2) ** 2).mean(axis=-1, keepdims=True)
    return (gn - m2) / jnp.sqrt(v2 + EPS) * ln_gamma + ln_beta


if __name__ == "__main__":
    key = jax.random.PRNGKey(0)
    kx, k1, k2, k3, k4 = jax.random.split(key, 5)

    N = 256   # rows (e.g. batch=32 sequences of length 8, flattened)
    x = jax.random.normal(kx, (N, D), dtype=jnp.float32)
    gn_gamma = 1.0 + 0.05 * jax.random.normal(k1, (D,), dtype=jnp.float32)
    gn_beta = 0.05 * jax.random.normal(k2, (D,), dtype=jnp.float32)
    ln_gamma = 1.0 + 0.05 * jax.random.normal(k3, (D,), dtype=jnp.float32)
    ln_beta = 0.05 * jax.random.normal(k4, (D,), dtype=jnp.float32)

    out = normalization_block(x, gn_gamma, gn_beta, ln_gamma, ln_beta)
    out = jax.block_until_ready(out)

    ref = _ref_forward(x, gn_gamma, gn_beta, ln_gamma, ln_beta)
    ref = jax.block_until_ready(ref)

    assert out.shape == (N, D) and out.dtype == jnp.float32
    np.testing.assert_allclose(np.asarray(out), np.asarray(ref), rtol=1e-4, atol=1e-4)
    print("KERNEL_OK")
</pallas_src>

<mosaic_0001>
module attributes {stable_mosaic.version = 11 : i64} {
  func.func @_norm_kernel(%arg0: i32, %arg1: memref<16x128xf32, #tpu.memory_space<vmem>>, %arg2: memref<4x128xf32, #tpu.memory_space<vmem>>, %arg3: memref<128x32xf32, #tpu.memory_space<vmem>>, %arg4: memref<32x128xf32, #tpu.memory_space<vmem>>, %arg5: memref<128x4xf32, #tpu.memory_space<vmem>>, %arg6: memref<4x128xf32, #tpu.memory_space<vmem>>, %arg7: memref<16x128xf32, #tpu.memory_space<vmem>>) attributes {dimension_semantics = [#tpu.dimension_semantics<parallel>], iteration_bounds = array<i64: 4>, scalar_prefetch = 0 : i64, scratch_operands = 0 : i64, tpu.core_type = #tpu.core_type<tc>, window_params = [{transform_indices = @transform_0, window_bounds = array<i64: 16, 128>}, {pipeline_mode = #tpu.pipeline_mode<synchronous>, transform_indices = @transform_1, window_bounds = array<i64: 4, 128>}, {pipeline_mode = #tpu.pipeline_mode<synchronous>, transform_indices = @transform_2, window_bounds = array<i64: 128, 32>}, {pipeline_mode = #tpu.pipeline_mode<synchronous>, transform_indices = @transform_3, window_bounds = array<i64: 32, 128>}, {pipeline_mode = #tpu.pipeline_mode<synchronous>, transform_indices = @transform_4, window_bounds = array<i64: 128, 4>}, {pipeline_mode = #tpu.pipeline_mode<synchronous>, transform_indices = @transform_5, window_bounds = array<i64: 4, 128>}, {transform_indices = @transform_6, window_bounds = array<i64: 16, 128>}]} {
    %c0 = arith.constant 0 : index
    %c0_0 = arith.constant 0 : index
    %0 = vector.load %arg1[%c0, %c0_0] : memref<16x128xf32, #tpu.memory_space<vmem>>, vector<16x128xf32>
    %c0_1 = arith.constant 0 : index
    %c0_2 = arith.constant 0 : index
    %1 = vector.load %arg2[%c0_1, %c0_2] : memref<4x128xf32, #tpu.memory_space<vmem>>, vector<4x128xf32>
    %2 = vector.extract_strided_slice %1 {offsets = [0, 0], sizes = [1, 128], strides = [1, 1]} : vector<4x128xf32> to vector<1x128xf32>
    %3 = vector.extract_strided_slice %1 {offsets = [1, 0], sizes = [1, 128], strides = [1, 1]} : vector<4x128xf32> to vector<1x128xf32>
    %4 = vector.extract_strided_slice %1 {offsets = [2, 0], sizes = [1, 128], strides = [1, 1]} : vector<4x128xf32> to vector<1x128xf32>
    %5 = vector.extract_strided_slice %1 {offsets = [3, 0], sizes = [1, 128], strides = [1, 1]} : vector<4x128xf32> to vector<1x128xf32>
    %c0_3 = arith.constant 0 : index
    %c0_4 = arith.constant 0 : index
    %6 = vector.load %arg3[%c0_3, %c0_4] : memref<128x32xf32, #tpu.memory_space<vmem>>, vector<128x32xf32>
    %c0_5 = arith.constant 0 : index
    %c0_6 = arith.constant 0 : index
    %7 = vector.load %arg4[%c0_5, %c0_6] : memref<32x128xf32, #tpu.memory_space<vmem>>, vector<32x128xf32>
    %c0_7 = arith.constant 0 : index
    %c0_8 = arith.constant 0 : index
    %8 = vector.load %arg5[%c0_7, %c0_8] : memref<128x4xf32, #tpu.memory_space<vmem>>, vector<128x4xf32>
    %c0_9 = arith.constant 0 : index
    %c0_10 = arith.constant 0 : index
    %9 = vector.load %arg6[%c0_9, %c0_10] : memref<4x128xf32, #tpu.memory_space<vmem>>, vector<4x128xf32>
    %cst = arith.constant dense<0.000000e+00> : vector<16x32xf32>
    %10 = tpu.matmul %0, %6, %cst {dimension_numbers = #tpu.dot_dimension_numbers<[1], [0], [0], [1], [0, 0, 1, 1], [], []>} : vector<16x128xf32>, vector<128x32xf32>, vector<16x32xf32> -> vector<16x32xf32>
    %cst_11 = arith.constant dense<0.000000e+00> : vector<16x128xf32>
    %11 = tpu.matmul %10, %7, %cst_11 {dimension_numbers = #tpu.dot_dimension_numbers<[1], [0], [0], [1], [0, 0, 1, 1], [], []>} : vector<16x32xf32>, vector<32x128xf32>, vector<16x128xf32> -> vector<16x128xf32>
    %12 = arith.subf %0, %11 : vector<16x128xf32>
    %13 = arith.mulf %12, %12 : vector<16x128xf32>
    %cst_12 = arith.constant dense<0.000000e+00> : vector<16x32xf32>
    %14 = tpu.matmul %13, %6, %cst_12 {dimension_numbers = #tpu.dot_dimension_numbers<[1], [0], [0], [1], [0, 0, 1, 1], [], []>} : vector<16x128xf32>, vector<128x32xf32>, vector<16x32xf32> -> vector<16x32xf32>
    %cst_13 = arith.constant dense<0.000000e+00> : vector<16x128xf32>
    %15 = tpu.matmul %14, %7, %cst_13 {dimension_numbers = #tpu.dot_dimension_numbers<[1], [0], [0], [1], [0, 0, 1, 1], [], []>} : vector<16x32xf32>, vector<32x128xf32>, vector<16x128xf32> -> vector<16x128xf32>
    %cst_14 = arith.constant 9.99999974E-6 : f32
    %16 = vector.broadcast %cst_14 : f32 to vector<16x128xf32>
    %17 = arith.addf %15, %16 : vector<16x128xf32>
    %18 = math.rsqrt %17 : vector<16x128xf32>
    %19 = arith.mulf %12, %18 : vector<16x128xf32>
    %20 = vector.broadcast %2 : vector<1x128xf32> to vector<16x128xf32>
    %21 = arith.mulf %19, %20 : vector<16x128xf32>
    %22 = vector.broadcast %3 : vector<1x128xf32> to vector<16x128xf32>
    %23 = arith.addf %21, %22 : vector<16x128xf32>
    %cst_15 = arith.constant dense<0.000000e+00> : vector<16x4xf32>
    %24 = tpu.matmul %23, %8, %cst_15 {dimension_numbers = #tpu.dot_dimension_numbers<[1], [0], [0], [1], [0, 0, 1, 1], [], []>} : vector<16x128xf32>, vector<128x4xf32>, vector<16x4xf32> -> vector<16x4xf32>
    %cst_16 = arith.constant dense<0.000000e+00> : vector<16x128xf32>
    %25 = tpu.matmul %24, %9, %cst_16 {dimension_numbers = #tpu.dot_dimension_numbers<[1], [0], [0], [1], [0, 0, 1, 1], [], []>} : vector<16x4xf32>, vector<4x128xf32>, vector<16x128xf32> -> vector<16x128xf32>
    %26 = arith.subf %23, %25 : vector<16x128xf32>
    %27 = arith.mulf %26, %26 : vector<16x128xf32>
    %cst_17 = arith.constant dense<0.000000e+00> : vector<16x4xf32>
    %28 = tpu.matmul %27, %8, %cst_17 {dimension_numbers = #tpu.dot_dimension_numbers<[1], [0], [0], [1], [0, 0, 1, 1], [], []>} : vector<16x128xf32>, vector<128x4xf32>, vector<16x4xf32> -> vector<16x4xf32>
    %cst_18 = arith.constant dense<0.000000e+00> : vector<16x128xf32>
    %29 = tpu.matmul %28, %9, %cst_18 {dimension_numbers = #tpu.dot_dimension_numbers<[1], [0], [0], [1], [0, 0, 1, 1], [], []>} : vector<16x4xf32>, vector<4x128xf32>, vector<16x128xf32> -> vector<16x128xf32>
    %cst_19 = arith.constant 9.99999974E-6 : f32
    %30 = vector.broadcast %cst_19 : f32 to vector<16x128xf32>
    %31 = arith.addf %29, %30 : vector<16x128xf32>
    %32 = math.rsqrt %31 : vector<16x128xf32>
    %33 = arith.mulf %26, %32 : vector<16x128xf32>
    %34 = vector.broadcast %4 : vector<1x128xf32> to vector<16x128xf32>
    %35 = arith.mulf %33, %34 : vector<16x128xf32>
    %36 = vector.broadcast %5 : vector<1x128xf32> to vector<16x128xf32>
    %37 = arith.addf %35, %36 : vector<16x128xf32>
    %c0_20 = arith.constant 0 : index
    %c0_21 = arith.constant 0 : index
    %38 = vector.load %arg7[%c0_20, %c0_21] : memref<16x128xf32, #tpu.memory_space<vmem>>, vector<16x128xf32>
    tpu.vector_store %arg7[%c0_20, %c0_21], %37 {strides = array<i32>} : memref<16x128xf32, #tpu.memory_space<vmem>>, vector<16x128xf32>,
    return
  }
  func.func @transform_0(%arg0: i32) -> (i32, i32) {
    %c0_i32 = arith.constant 0 : i32
    %c0_i32_0 = arith.constant 0 : i32
    return %arg0, %c0_i32 : i32, i32
  }
  func.func @transform_1(%arg0: i32) -> (i32, i32) {
    %c0_i32 = arith.constant 0 : i32
    %c0_i32_0 = arith.constant 0 : i32
    %c0_i32_1 = arith.constant 0 : i32
    return %c0_i32, %c0_i32_0 : i32, i32
  }
  func.func @transform_2(%arg0: i32) -> (i32, i32) {
    %c0_i32 = arith.constant 0 : i32
    %c0_i32_0 = arith.constant 0 : i32
    %c0_i32_1 = arith.constant 0 : i32
    return %c0_i32, %c0_i32_0 : i32, i32
  }
  func.func @transform_3(%arg0: i32) -> (i32, i32) {
    %c0_i32 = arith.constant 0 : i32
    %c0_i32_0 = arith.constant 0 : i32
    %c0_i32_1 = arith.constant 0 : i32
    return %c0_i32, %c0_i32_0 : i32, i32
  }
  func.func @transform_4(%arg0: i32) -> (i32, i32) {
    %c0_i32 = arith.constant 0 : i32
    %c0_i32_0 = arith.constant 0 : i32
    %c0_i32_1 = arith.constant 0 : i32
    return %c0_i32, %c0_i32_0 : i32, i32
  }
  func.func @transform_5(%arg0: i32) -> (i32, i32) {
    %c0_i32 = arith.constant 0 : i32
    %c0_i32_0 = arith.constant 0 : i32
    %c0_i32_1 = arith.constant 0 : i32
    return %c0_i32, %c0_i32_0 : i32, i32
  }
  func.func @transform_6(%arg0: i32) -> (i32, i32) {
    %c0_i32 = arith.constant 0 : i32
    %c0_i32_0 = arith.constant 0 : i32
    return %arg0, %c0_i32 : i32, i32
  }
}

</mosaic_0001>

<llo_original>
// kernel: tile.36
$region0: #{tile.36}
  %s0 = inlined_call_operand.vmem [shape: f32[4,32], index: 0, kind: input, shape index: {}]
  %s1 = inlined_call_operand.vmem [shape: f32[1,128], index: 1, kind: output, shape index: {}]
  $region1: #{tile.36} parent=0
    #allocation0 [shape = 'u8[4096]{0}', space=vmem, size = 0x1000, scoped, tag = 'scoped mem for output reshape']
    #allocation1 [shape = 'u8[4096]{0}', space=vmem, size = 0x1000, scoped, tag = 'scoped mem for input reshape']
    %s3 = ssub.s32 16, 1
    %v4 = vld [vmem:[%s0] sm:%s3]
    %5 = vst [vmem:[#allocation1] sm:%s3] %v4
    %v6 = vld [vmem:[#allocation1] sm:$0x1]
    %vm7 = vcmask 261120
    %8 = vst.msk [vmem:[#allocation0] sm:$0x1] %vm7, %v6
    %s9 = scalar_lea.vmem [#allocation1], 3
    %v10 = vld [vmem:[%s9] sm:$0x1]
    %11 = vrot.lane.b32.xlu0 %v10, 96
    %v12 = vpop.permute.xlu0 %11
    %vm13 = vcmask 1048320
    %14 = vst.msk [vmem:[#allocation0] sm:$0x1] %vm13, %v12
    %s15 = scalar_lea.vmem [#allocation1], 2
    %v16 = vld [vmem:[%s15] sm:$0x1]
    %17 = vrot.lane.b32.xlu0 %v16, 64
    %v18 = vpop.permute.xlu0 %17
    %vm19 = vcmask 785920
    %20 = vst.msk [vmem:[#allocation0] sm:$0x1] %vm19, %v18
    %s21 = scalar_lea.vmem [#allocation1], 1
    %v22 = vld [vmem:[%s21] sm:$0x1]
    %23 = vrot.lane.b32.xlu0 %v22, 32
    %v24 = vpop.permute.xlu0 %23
    %vm25 = vcmask 523520
    %26 = vst.msk [vmem:[#allocation0] sm:$0x1] %vm25, %v24
    %s28 = ssub.s32 2, 1
    %v29 = vld [vmem:[#allocation0] sm:%s28]
    %s31 = ssub.s32 2, 1
    %32 = vst [vmem:[%s1] sm:%s31] %v29

// kernel: tile.23
$region0: #{tile.23}
  #allocation0 [shape = 's32[1]{0}', space=sflag, size = 0x4, scoped, tag = 'scoped memory for tile.23']
  %s0 = inlined_call_operand.vmem [shape: f32[32], index: 0, kind: input, shape index: {}]
  %s1 = inlined_call_operand.vmem [shape: f32[4,32], index: 1, kind: output, shape index: {}]
  // Predicated region
  $region2: #{tile.23} parent=0 // pred_check
    _
  $region3: #{tile.23} parent=0 // pred_check_branch
    %3 = sbr.rel (0) target = $region5
  $region4: #{tile.23} parent=0 // pred_region
    _
  $region5: #{tile.23} parent=0 // pred_fallthru
    _
  %v4 = vld [vmem:[%s0] ss:$0 sm:$0xff]
  %5 = vst [vmem:[%s1] sm:$0xf] %v4

// kernel: normalization_block.1
$region0: #{normalization_block.1}
  #allocation0 [shape = 'u32[]', space=smem, size = 0x4, offset = 0x4, fixed_abs, tag = 'smem constant byte address 0x4 - core index']
  #allocation1 [shape = 'u32[72,128]{1,0:T(1,128)}', space=vmem, size = 0x9000, scoped, tag = 'internal scratch']
  %s0 = inlined_call_operand.vmem [shape: f32[64,128], index: 0, kind: input, shape index: {}]
  %s1 = inlined_call_operand.vmem [shape: f32[4,128], index: 1, kind: input, shape index: {}]
  %s2 = inlined_call_operand.vmem [shape: f32[128,32], index: 2, kind: input, shape index: {}]
  %s3 = inlined_call_operand.vmem [shape: f32[32,128], index: 3, kind: input, shape index: {}]
  %s4 = inlined_call_operand.vmem [shape: f32[128,4], index: 4, kind: input, shape index: {}]
  %s5 = inlined_call_operand.vmem [shape: f32[4,128], index: 5, kind: input, shape index: {}]
  %s6 = inlined_call_operand.vmem [shape: f32[64,128], index: 6, kind: output, shape index: {}]
  %s7 = sld [smem:[#allocation0]]
  $region57: #{normalization_block.1} parent=0
    _
  %s9 = ssub.s32 1, %s7
  %s10 = scalar_select 0, %s9, %s7
  loop: start=0, step=1, limit=6
  $region2: #{normalization_block.1} parent=0 // loop_pre_header
    _
  $region3: #{normalization_block.1} parent=0 // loop_header
    %s12 = sphi 0, %s16
    %p13 = scmp.ge.s32.totalorder %s12, 6
    %s22 = sphi 0, %s24
    %s25 = sphi 0, %s22
    %s26 = sphi 0, %s25
    %s42 = sphi 0, %s26
    %s46 = sphi 0, %s46
    %s48 = sphi 0, %s46
    %s49 = sphi 0, %s48
    %s63 = sphi 0, %s49
    %s67 = sphi 0, %s67
    %s69 = sphi 0, %s67
    %s70 = sphi 0, %s69
    %s84 = sphi 0, %s70
    %s88 = sphi 0, %s88
    %s90 = sphi 0, %s88
    %s91 = sphi 0, %s90
    %s105 = sphi 0, %s91
    %s109 = sphi 0, %s109
    %s111 = sphi 0, %s109
    %s112 = sphi 0, %s111
    %s126 = sphi 0, %s112
    %s130 = sphi 0, %s130
    %s132 = sphi 0, %s130
    %s133 = sphi 0, %s132
    %s147 = sphi 0, %s133
    %s153 = sphi 0, %s155
    %s156 = sphi 0, %s153
    %s157 = sphi 0, %s156
    %s173 = sphi 0, %s157
  $region4: #{normalization_block.1} parent=0 // loop_header_branch
    %15 = sbr.rel (%p13) target = $region8
  $region5: #{normalization_block.1} parent=0 // loop_body
    %s17 = ssub.s32 %s12, 1
    %s18 = ssub.s32 %s12, 2
    %s19 = sadd.s32 %s12, 1
    %s20 = ssub.s32 %s12, %s19
    %p21 = scmp.eq.s32.totalorder %s20, 0
    %s23 = sadd.s32 %s22, 1
    %s24 = scalar_select %p21, %s22, %s23
    %p27 = pneg %p21
    %p28 = scmp.eq.s32.totalorder %s12, 3
    %p29 = por %p27, %p28
    %p30 = scmp.ne.s32.totalorder %s22, %s25
    %p31 = scmp.eq.s32.totalorder %s12, 0
    %p32 = por %p30, %p31
    %p33 = scmp.ne.s32.totalorder %s22, %s25
    %p34 = scmp.eq.s32.totalorder %s17, 3
    %p35 = por %p33, %p34
    %p36 = scmp.ne.s32.totalorder %s25, %s26
    %p37 = scmp.eq.s32.totalorder %s17, 0
    %p38 = por %p36, %p37
    %p39 = scmp.ne.s32.totalorder %s25, %s26
    %p40 = scmp.eq.s32.totalorder %s18, 3
    %p41 = por %p39, %p40
    %p43 = scmp.ne.s32.totalorder %s26, %s42
    %p44 = scmp.eq.s32.totalorder %s18, 0
    %p45 = por %p43, %p44
    %s47 = sadd.s32 %s46, 1
    %p50 = scmp.eq.s32.totalorder %s12, 3
    %p51 = scmp.ne.s32.totalorder %s46, %s48
    %p52 = scmp.eq.s32.totalorder %s12, 0
    %p53 = por %p51, %p52
    %p54 = scmp.ne.s32.totalorder %s46, %s48
    %p55 = scmp.eq.s32.totalorder %s17, 3
    %p56 = por %p54, %p55
    %p57 = scmp.ne.s32.totalorder %s48, %s49
    %p58 = scmp.eq.s32.totalorder %s17, 0
    %p59 = por %p57, %p58
    %p60 = scmp.ne.s32.totalorder %s48, %s49
    %p61 = scmp.eq.s32.totalorder %s18, 3
    %p62 = por %p60, %p61
    %p64 = scmp.ne.s32.totalorder %s49, %s63
    %p65 = scmp.eq.s32.totalorder %s18, 0
    %p66 = por %p64, %p65
    %s68 = sadd.s32 %s67, 1
    %p71 = scmp.eq.s32.totalorder %s12, 3
    %p72 = scmp.ne.s32.totalorder %s67, %s69
    %p73 = scmp.eq.s32.totalorder %s12, 0
    %p74 = por %p72, %p73
    %p75 = scmp.ne.s32.totalorder %s67, %s69
    %p76 = scmp.eq.s32.totalorder %s17, 3
    %p77 = por %p75, %p76
    %p78 = scmp.ne.s32.totalorder %s69, %s70
    %p79 = scmp.eq.s32.totalorder %s17, 0
    %p80 = por %p78, %p79
    %p81 = scmp.ne.s32.totalorder %s69, %s70
    %p82 = scmp.eq.s32.totalorder %s18, 3
    %p83 = por %p81, %p82
    %p85 = scmp.ne.s32.totalorder %s70, %s84
    %p86 = scmp.eq.s32.totalorder %s18, 0
    %p87 = por %p85, %p86
    %s89 = sadd.s32 %s88, 1
    %p92 = scmp.eq.s32.totalorder %s12, 3
    %p93 = scmp.ne.s32.totalorder %s88, %s90
    %p94 = scmp.eq.s32.totalorder %s12, 0
    %p95 = por %p93, %p94
    %p96 = scmp.ne.s32.totalorder %s88, %s90
    %p97 = scmp.eq.s32.totalorder %s17, 3
    %p98 = por %p96, %p97
    %p99 = scmp.ne.s32.totalorder %s90, %s91
    %p100 = scmp.eq.s32.totalorder %s17, 0
    %p101 = por %p99, %p100
    %p102 = scmp.ne.s32.totalorder %s90, %s91
    %p103 = scmp.eq.s32.totalorder %s18, 3
    %p104 = por %p102, %p103
    %p106 = scmp.ne.s32.totalorder %s91, %s105
    %p107 = scmp.eq.s32.totalorder %s18, 0
    %p108 = por %p106, %p107
    %s110 = sadd.s32 %s109, 1
    %p113 = scmp.eq.s32.totalorder %s12, 3
    %p114 = scmp.ne.s32.totalorder %s109, %s111
    %p115 = scmp.eq.s32.totalorder %s12, 0
    %p116 = por %p114, %p115
    %p117 = scmp.ne.s32.totalorder %s109, %s111
    %p118 = scmp.eq.s32.totalorder %s17, 3
    %p119 = por %p117, %p118
    %p120 = scmp.ne.s32.totalorder %s111, %s112
    %p121 = scmp.eq.s32.totalorder %s17, 0
    %p122 = por %p120, %p121
    %p123 = scmp.ne.s32.totalorder %s111, %s112
    %p124 = scmp.eq.s32.totalorder %s18, 3
    %p125 = por %p123, %p124
    %p127 = scmp.ne.s32.totalorder %s112, %s126
    %p128 = scmp.eq.s32.totalorder %s18, 0
    %p129 = por %p127, %p128
    %s131 = sadd.s32 %s130, 1
    %p134 = scmp.eq.s32.totalorder %s12, 3
    %p135 = scmp.ne.s32.totalorder %s130, %s132
    %p136 = scmp.eq.s32.totalorder %s12, 0
    %p137 = por %p135, %p136
    %p138 = scmp.ne.s32.totalorder %s130, %s132
    %p139 = scmp.eq.s32.totalorder %s17, 3
    %p140 = por %p138, %p139
    %p141 = scmp.ne.s32.totalorder %s132, %s133
    %p142 = scmp.eq.s32.totalorder %s17, 0
    %p143 = por %p141, %p142
    %p144 = scmp.ne.s32.totalorder %s132, %s133
    %p145 = scmp.eq.s32.totalorder %s18, 3
    %p146 = por %p144, %p145
    %p148 = scmp.ne.s32.totalorder %s133, %s147
    %p149 = scmp.eq.s32.totalorder %s18, 0
    %p150 = por %p148, %p149
    %s151 = ssub.s32 %s12, %s19
    %p152 = scmp.eq.s32.totalorder %s151, 0
    %s154 = sadd.s32 %s153, 1
    %s155 = scalar_select %p152, %s153, %s154
    %p158 = pneg %p152
    %p159 = scmp.eq.s32.totalorder %s12, 3
    %p160 = por %p158, %p159
    %p161 = scmp.ne.s32.totalorder %s153, %s156
    %p162 = scmp.eq.s32.totalorder %s12, 0
    %p163 = por %p161, %p162
    %p164 = scmp.ne.s32.totalorder %s153, %s156
    %p165 = scmp.eq.s32.totalorder %s17, 3
    %p166 = por %p164, %p165
    %p167 = scmp.ne.s32.totalorder %s156, %s157
    %p168 = scmp.eq.s32.totalorder %s17, 0
    %p169 = por %p167, %p168
    %p170 = scmp.ne.s32.totalorder %s156, %s157
    %p171 = scmp.eq.s32.totalorder %s18, 3
    %p172 = por %p170, %p171
    %p174 = scmp.ne.s32.totalorder %s157, %s173
    %p175 = scmp.eq.s32.totalorder %s18, 0
    %p176 = por %p174, %p175
    %p177 = scmp.le.s32.totalorder 1, %s12
    %p178 = scmp.lt.s32.totalorder %s12, 5
    %p179 = pnand %p177, %p178
    %p180 = pneg %p179
    // Predicated region
    $region9: #{normalization_block.1} parent=5 // pred_check
      _
    $region10: #{normalization_block.1} parent=5 // pred_check_branch
      %182 = sbr.rel (%p179) target = $region12
    $region11: #{normalization_block.1} parent=5 // pred_region
      %s183 = ssub.s32 %s12, 1
      // Predicated region
      $region13: #{normalization_block.1} parent=11 // pred_check
        %p184 = pneg %p59
      $region14: #{normalization_block.1} parent=11 // pred_check_branch
        %186 = sbr.rel (%p184) target = $region16
      $region15: #{normalization_block.1} parent=11 // pred_region
        _
      $region16: #{normalization_block.1} parent=11 // pred_fallthru
        _
      // Predicated region
      $region17: #{normalization_block.1} parent=11 // pred_check
        %p187 = pneg %p80
      $region18: #{normalization_block.1} parent=11 // pred_check_branch
        %189 = sbr.rel (%p187) target = $region20
      $region19: #{normalization_block.1} parent=11 // pred_region
        _
      $region20: #{normalization_block.1} parent=11 // pred_fallthru
        _
      // Predicated region
      $region21: #{normalization_block.1} parent=11 // pred_check
        %p190 = pneg %p101
      $region22: #{normalization_block.1} parent=11 // pred_check_branch
        %192 = sbr.rel (%p190) target = $region24
      $region23: #{normalization_block.1} parent=11 // pred_region
        _
      $region24: #{normalization_block.1} parent=11 // pred_fallthru
        _
      // Predicated region
      $region25: #{normalization_block.1} parent=11 // pred_check
        %p193 = pneg %p122
      $region26: #{normalization_block.1} parent=11 // pred_check_branch
        %195 = sbr.rel (%p193) target = $region28
      $region27: #{normalization_block.1} parent=11 // pred_region
        _
      $region28: #{normalization_block.1} parent=11 // pred_fallthru
        _
      // Predicated region
      $region29: #{normalization_block.1} parent=11 // pred_check
        %p196 = pneg %p143
      $region30: #{normalization_block.1} parent=11 // pred_check_branch
        %198 = sbr.rel (%p196) target = $region32
      $region31: #{normalization_block.1} parent=11 // pred_region
        _
      $region32: #{normalization_block.1} parent=11 // pred_fallthru
        _
    $region12: #{normalization_block.1} parent=5 // pred_fallthru
      _
    %p199 = scmp.lt.s32.totalorder %s12, 4
    // Predicated region
    $region33: #{normalization_block.1} parent=5 // pred_check
      %p200 = pneg %p199
    $region34: #{normalization_block.1} parent=5 // pred_check_branch
      %202 = sbr.rel (%p200) target = $region36
    $region35: #{normalization_block.1} parent=5 // pred_region
      // Predicated region
      $region37: #{normalization_block.1} parent=35 // pred_check
        %p203 = pneg %p32
      $region38: #{normalization_block.1} parent=35 // pred_check_branch
        %205 = sbr.rel (%p203) target = $region40
      $region39: #{normalization_block.1} parent=35 // pred_region
        %s206 = smul.u32 2, %s12
        %p207 = scmp.lt.s32.totalorder %s206, 7
        %s208 = scalar_select %p207, %s206, 7
        %s209 = smul.addr %s208, 8
        %s210 = scalar_lea.vmem %s0, %s209
        %s211 = smul.u32 2, %s12
      $region40: #{normalization_block.1} parent=35 // pred_fallthru
        _
    $region36: #{normalization_block.1} parent=5 // pred_fallthru
      _
    %p212 = scmp.le.s32.totalorder 1, %s12
    %p213 = scmp.lt.s32.totalorder %s12, 5
    %p214 = pnand %p212, %p213
    %p215 = pneg %p214
    // Predicated region
    $region41: #{normalization_block.1} parent=5 // pred_check
      _
    $region42: #{normalization_block.1} parent=5 // pred_check_branch
      %217 = sbr.rel (%p214) target = $region44
    $region43: #{normalization_block.1} parent=5 // pred_region
      %s218 = ssub.s32 %s12, 1
      %s219 = smul.u32 2, %s17
      %p220 = scmp.lt.s32.totalorder %s219, 7
      %s221 = scalar_select %p220, %s219, 7
      %s222 = smul.addr %s221, 8
      %s223 = scalar_lea.vmem %s0, %s222
      %p224 = pneg %p38
      %p225 = pneg %p35
      %p226 = pneg %p59
      %p227 = pneg %p56
      %p228 = pneg %p80
      %p229 = pneg %p77
      %p230 = pneg %p101
      %p231 = pneg %p98
      %p232 = pneg %p122
      %p233 = pneg %p119
      %p234 = pneg %p143
      %p235 = pneg %p140
      %p236 = pneg %p169
      %p237 = pneg %p166
      %s238 = smul.u32 2, %s17
      %p239 = scmp.lt.s32.totalorder %s238, 7
      %s240 = scalar_select %p239, %s238, 7
      %s241 = smul.addr %s240, 8
      %s242 = scalar_lea.vmem %s6, %s241
      %s243 = smul.u32 2, %s17
      %p244 = scmp.lt.s32.totalorder %s243, 7
      %s245 = scalar_select %p244, %s243, 7
      %s246 = smul.addr %s245, 8
      %s247 = scalar_lea.vmem %s0, %s246
      %s248 = smul.u32 2, %s17
      %s249 = smul.u32 2, %s17
      %p250 = scmp.lt.s32.totalorder %s249, 7
      %s251 = scalar_select %p250, %s249, 7
      %s252 = smul.addr %s251, 8
      %s253 = scalar_lea.vmem %s6, %s252
      %s254 = smul.u32 2, %s17
      %v255 = vld [vmem:[%s247] sm:$0xff]
      %v256 = vld [vmem:[%s247 + $0x8] sm:$0xff]
      %v257 = vld [vmem:[%s1] sm:$0xf]
      %v258 = vld [vmem:[%s2] sm:$0xff]
      %v259 = vld [vmem:[%s2 + $0x8] sm:$0xff]
      %v260 = vld [vmem:[%s2 + $0x10] sm:$0xff]
      %v261 = vld [vmem:[%s2 + $0x18] sm:$0xff]
      %v262 = vld [vmem:[%s2 + $0x20] sm:$0xff]
      %v263 = vld [vmem:[%s2 + $0x28] sm:$0xff]
      %v264 = vld [vmem:[%s2 + $0x30] sm:$0xff]
      %v265 = vld [vmem:[%s2 + $0x38] sm:$0xff]
      %v266 = vld [vmem:[%s2 + $0x40] sm:$0xff]
      %v267 = vld [vmem:[%s2 + $0x48] sm:$0xff]
      %v268 = vld [vmem:[%s2 + $0x50] sm:$0xff]
      %v269 = vld [vmem:[%s2 + $0x58] sm:$0xff]
      %v270 = vld [vmem:[%s2 + $0x60] sm:$0xff]
      %v271 = vld [vmem:[%s2 + $0x68] sm:$0xff]
      %v272 = vld [vmem:[%s2 + $0x70] sm:$0xff]
      %v273 = vld [vmem:[%s2 + $0x78] sm:$0xff]
      %v274 = vld [vmem:[%s3] sm:$0xff]
      %v275 = vld [vmem:[%s3 + $0x8] sm:$0xff]
      %v276 = vld [vmem:[%s3 + $0x10] sm:$0xff]
      %v277 = vld [vmem:[%s3 + $0x18] sm:$0xff]
      %v278 = vld [vmem:[%s4] sm:$0xff]
      %v279 = vld [vmem:[%s4 + $0x8] sm:$0xff]
      %v280 = vld [vmem:[%s4 + $0x10] sm:$0xff]
      %v281 = vld [vmem:[%s4 + $0x18] sm:$0xff]
      %v282 = vld [vmem:[%s4 + $0x20] sm:$0xff]
      %v283 = vld [vmem:[%s4 + $0x28] sm:$0xff]
      %v284 = vld [vmem:[%s4 + $0x30] sm:$0xff]
      %v285 = vld [vmem:[%s4 + $0x38] sm:$0xff]
      %v286 = vld [vmem:[%s4 + $0x40] sm:$0xff]
      %v287 = vld [vmem:[%s4 + $0x48] sm:$0xff]
      %v288 = vld [vmem:[%s4 + $0x50] sm:$0xff]
      %v289 = vld [vmem:[%s4 + $0x58] sm:$0xff]
      %v290 = vld [vmem:[%s4 + $0x60] sm:$0xff]
      %v291 = vld [vmem:[%s4 + $0x68] sm:$0xff]
      %v292 = vld [vmem:[%s4 + $0x70] sm:$0xff]
      %v293 = vld [vmem:[%s4 + $0x78] sm:$0xff]
      %v294 = vld [vmem:[%s5] sm:$0xf]
      %295 = vmatpush.msra.mxu0 %v273
      %296 = vmatpush.msra.mxu0 %v272
      %297 = vmatpush.msra.mxu0 %v271
      %298 = vmatpush.msra.mxu0 %v270
      %299 = vmatpush.msra.mxu0 %v269
      %300 = vmatpush.msra.mxu0 %v268
      %301 = vmatpush.msra.mxu0 %v267
      %302 = vmatpush.msra.mxu0 %v266
      %303 = vmatpush.msra.mxu0 %v265
      %304 = vmatpush.msra.mxu0 %v264
      %305 = vmatpush.msra.mxu0 %v263
      %306 = vmatpush.msra.mxu0 %v262
      %307 = vmatpush.msra.mxu0 %v261
      %308 = vmatpush.msra.mxu0 %v260
      %309 = vmatpush.msra.mxu0 %v259
      %310 = vmatpush.msra.mxu0 %v258
      %311 = vmatmul.f32.gmra.mxu0 %v255
      %v312 = vpop.f32.mrf.mxu0
      %v313 = vadd.f32 0.0, %v312
      %314 = vmatmul.f32.gmra.mxu0 %v256
      %v315 = vpop.f32.mrf.mxu0
      %v316 = vadd.f32 0.0, %v315
      %317 = vdwg.mxu0
      %vm318 = vcmask 261120
      %v320 = vsel %vm318, %v313, 0
      %v323 = vsel %vm318, %v316, 0
      %325 = vmatpush.msra.mxu0 0.0
      %326 = vmatpush.msra.mxu0 0.0
      %327 = vmatpush.msra.mxu0 0.0
      %328 = vmatpush.msra.mxu0 0.0
      %329 = vmatpush.msra.mxu0 0.0
      %330 = vmatpush.msra.mxu0 0.0
      %331 = vmatpush.msra.mxu0 0.0
      %332 = vmatpush.msra.mxu0 0.0
      %333 = vmatpush.msra.mxu0 0.0
      %334 = vmatpush.msra.mxu0 0.0
      %335 = vmatpush.msra.mxu0 0.0
      %336 = vmatpush.msra.mxu0 0.0
      %337 = vmatpush.msra.mxu0 %v277
      %338 = vmatpush.msra.mxu0 %v276
      %339 = vmatpush.msra.mxu0 %v275
      %340 = vmatpush.msra.mxu0 %v274
      %341 = vmatmul.f32.gmra.mxu0 %v320
      %v342 = vpop.f32.mrf.mxu0
      %v343 = vadd.f32 0.0, %v342
      %344 = vmatmul.f32.gmra.mxu0 %v323
      %v345 = vpop.f32.mrf.mxu0
      %v346 = vadd.f32 0.0, %v345
      %347 = vdwg.mxu0
      %v348 = vsub.f32 %v255, %v343
      %v349 = vsub.f32 %v256, %v346
      %v350 = vmul.f32 %v348, %v348
      %v351 = vmul.f32 %v349, %v349
      %352 = vmatpush.msra.mxu0 %v273
      %353 = vmatpush.msra.mxu0 %v272
      %354 = vmatpush.msra.mxu0 %v271
      %355 = vmatpush.msra.mxu0 %v270
      %356 = vmatpush.msra.mxu0 %v269
      %357 = vmatpush.msra.mxu0 %v268
      %358 = vmatpush.msra.mxu0 %v267
      %359 = vmatpush.msra.mxu0 %v266
      %360 = vmatpush.msra.mxu0 %v265
      %361 = vmatpush.msra.mxu0 %v264
      %362 = vmatpush.msra.mxu0 %v263
      %363 = vmatpush.msra.mxu0 %v262
      %364 = vmatpush.msra.mxu0 %v261
      %365 = vmatpush.msra.mxu0 %v260
      %366 = vmatpush.msra.mxu0 %v259
      %367 = vmatpush.msra.mxu0 %v258
      %368 = vmatmul.f32.gmra.mxu0 %v350
      %v369 = vpop.f32.mrf.mxu0
      %v370 = vadd.f32 0.0, %v369
      %371 = vmatmul.f32.gmra.mxu0 %v351
      %v372 = vpop.f32.mrf.mxu0
      %v373 = vadd.f32 0.0, %v372
      %374 = vdwg.mxu0
      %v376 = vsel %vm318, %v370, 0
      %v379 = vsel %vm318, %v373, 0
      %381 = vmatpush.msra.mxu0 0.0
      %382 = vmatpush.msra.mxu0 0.0
      %383 = vmatpush.msra.mxu0 0.0
      %384 = vmatpush.msra.mxu0 0.0
      %385 = vmatpush.msra.mxu0 0.0
      %386 = vmatpush.msra.mxu0 0.0
      %387 = vmatpush.msra.mxu0 0.0
      %388 = vmatpush.msra.mxu0 0.0
      %389 = vmatpush.msra.mxu0 0.0
      %390 = vmatpush.msra.mxu0 0.0
      %391 = vmatpush.msra.mxu0 0.0
      %392 = vmatpush.msra.mxu0 0.0
      %393 = vmatpush.msra.mxu0 %v277
      %394 = vmatpush.msra.mxu0 %v276
      %395 = vmatpush.msra.mxu0 %v275
      %396 = vmatpush.msra.mxu0 %v274
      %397 = vmatmul.f32.gmra.mxu0 %v376
      %v398 = vpop.f32.mrf.mxu0
      %v399 = vadd.f32 1e-05, %v398
      %400 = vmatmul.f32.gmra.mxu0 %v379
      %v401 = vpop.f32.mrf.mxu0
      %v402 = vadd.f32 1e-05, %v401
      %403 = vdwg.mxu0
      %v404 = vrsqrt.pop %v399
      %v405 = vmul.f32 %v404, %v399
      %v406 = vmul.f32 %v405, %v404
      %v407 = vmul.f32 0.5, %v406
      %v408 = vsub.f32 1.5, %v407
      %v409 = vmul.f32 %v404, %v408
      %vm410 = vweird.f32 %v399
      %vm411 = vweird.f32 %v404
      %vm412 = vmor %vm410, %vm411
      %v413 = vsel %vm412, %v404, %v409
      %v414 = vrsqrt.pop %v402
      %v415 = vmul.f32 %v414, %v402
      %v416 = vmul.f32 %v415, %v414
      %v417 = vmul.f32 0.5, %v416
      %v418 = vsub.f32 1.5, %v417
      %v419 = vmul.f32 %v414, %v418
      %vm420 = vweird.f32 %v402
      %vm421 = vweird.f32 %v414
      %vm422 = vmor %vm420, %vm421
      %v423 = vsel %vm422, %v414, %v419
      %v424 = vmul.f32 %v348, %v413
      %v425 = vmul.f32 %v349, %v423
      %v426 = vperm.slane %v257, 0
      %v427 = vmul.f32 %v424, %v426
      %v428 = vmul.f32 %v425, %v426
      %v429 = vperm.slane %v257, 1
      %v430 = vadd.f32 %v427, %v429
      %v431 = vadd.f32 %v428, %v429
      %432 = vmatpush.msra.mxu0 %v293
      %433 = vmatpush.msra.mxu0 %v292
      %434 = vmatpush.msra.mxu0 %v291
      %435 = vmatpush.msra.mxu0 %v290
      %436 = vmatpush.msra.mxu0 %v289
      %437 = vmatpush.msra.mxu0 %v288
      %438 = vmatpush.msra.mxu0 %v287
      %439 = vmatpush.msra.mxu0 %v286
      %440 = vmatpush.msra.mxu0 %v285
      %441 = vmatpush.msra.mxu0 %v284
      %442 = vmatpush.msra.mxu0 %v283
      %443 = vmatpush.msra.mxu0 %v282
      %444 = vmatpush.msra.mxu0 %v281
      %445 = vmatpush.msra.mxu0 %v280
      %446 = vmatpush.msra.mxu0 %v279
      %447 = vmatpush.msra.mxu0 %v278
      %448 = vmatmul.f32.gmra.mxu0 %v430
      %v449 = vpop.f32.mrf.mxu0
      %v450 = vadd.f32 0.0, %v449
      %451 = vmatmul.f32.gmra.mxu0 %v431
      %v452 = vpop.f32.mrf.mxu0
      %v453 = vadd.f32 0.0, %v452
      %454 = vdwg.mxu0
      %vm455 = vcmask 31744
      %v457 = vsel %vm455, %v450, 0
      %v460 = vsel %vm455, %v453, 0
      %vm462 = vcmask 1043456
      %v464 = vsel %vm462, %v294, 0
      %466 = vmatpush.msra.mxu0 0.0
      %467 = vmatpush.msra.mxu0 0.0
      %468 = vmatpush.msra.mxu0 0.0
      %469 = vmatpush.msra.mxu0 0.0
      %470 = vmatpush.msra.mxu0 0.0
      %471 = vmatpush.msra.mxu0 0.0
      %472 = vmatpush.msra.mxu0 0.0
      %473 = vmatpush.msra.mxu0 0.0
      %474 = vmatpush.msra.mxu0 0.0
      %475 = vmatpush.msra.mxu0 0.0
      %476 = vmatpush.msra.mxu0 0.0
      %477 = vmatpush.msra.mxu0 0.0
      %478 = vmatpush.msra.mxu0 0.0
      %479 = vmatpush.msra.mxu0 0.0
      %480 = vmatpush.msra.mxu0 0.0
      %481 = vmatpush.msra.mxu0 %v464
      %482 = vmatmul.f32.gmra.mxu0 %v457
      %v483 = vpop.f32.mrf.mxu0
      %v484 = vadd.f32 0.0, %v483
      %485 = vmatmul.f32.gmra.mxu0 %v460
      %v486 = vpop.f32.mrf.mxu0
      %v487 = vadd.f32 0.0, %v486
      %488 = vdwg.mxu0
      %v489 = vsub.f32 %v430, %v484
      %v490 = vsub.f32 %v431, %v487
      %v491 = vmul.f32 %v489, %v489
      %v492 = vmul.f32 %v490, %v490
      %493 = vmatpush.msra.mxu0 %v293
      %494 = vmatpush.msra.mxu0 %v292
      %495 = vmatpush.msra.mxu0 %v291
      %496 = vmatpush.msra.mxu0 %v290
      %497 = vmatpush.msra.mxu0 %v289
      %498 = vmatpush.msra.mxu0 %v288
      %499 = vmatpush.msra.mxu0 %v287
      %500 = vmatpush.msra.mxu0 %v286
      %501 = vmatpush.msra.mxu0 %v285
      %502 = vmatpush.msra.mxu0 %v284
      %503 = vmatpush.msra.mxu0 %v283
      %504 = vmatpush.msra.mxu0 %v282
      %505 = vmatpush.msra.mxu0 %v281
      %506 = vmatpush.msra.mxu0 %v280
      %507 = vmatpush.msra.mxu0 %v279
      %508 = vmatpush.msra.mxu0 %v278
      %509 = vmatmul.f32.gmra.mxu0 %v491
      %v510 = vpop.f32.mrf.mxu0
      %v511 = vadd.f32 0.0, %v510
      %512 = vmatmul.f32.gmra.mxu0 %v492
      %v513 = vpop.f32.mrf.mxu0
      %v514 = vadd.f32 0.0, %v513
      %515 = vdwg.mxu0
      %v517 = vsel %vm455, %v511, 0
      %v520 = vsel %vm455, %v514, 0
      %522 = vmatpush.msra.mxu0 0.0
      %523 = vmatpush.msra.mxu0 0.0
      %524 = vmatpush.msra.mxu0 0.0
      %525 = vmatpush.msra.mxu0 0.0
      %526 = vmatpush.msra.mxu0 0.0
      %527 = vmatpush.msra.mxu0 0.0
      %528 = vmatpush.msra.mxu0 0.0
      %529 = vmatpush.msra.mxu0 0.0
      %530 = vmatpush.msra.mxu0 0.0
      %531 = vmatpush.msra.mxu0 0.0
      %532 = vmatpush.msra.mxu0 0.0
      %533 = vmatpush.msra.mxu0 0.0
      %534 = vmatpush.msra.mxu0 0.0
      %535 = vmatpush.msra.mxu0 0.0
      %536 = vmatpush.msra.mxu0 0.0
      %537 = vmatpush.msra.mxu0 %v464
      %538 = vmatmul.f32.gmra.mxu0 %v517
      %v539 = vpop.f32.mrf.mxu0
      %v540 = vadd.f32 1e-05, %v539
      %541 = vmatmul.f32.gmra.mxu0 %v520
      %v542 = vpop.f32.mrf.mxu0
      %v543 = vadd.f32 1e-05, %v542
      %544 = vdwg.mxu0
      %v545 = vrsqrt.pop %v540
      %v546 = vmul.f32 %v545, %v540
      %v547 = vmul.f32 %v546, %v545
      %v548 = vmul.f32 0.5, %v547
      %v549 = vsub.f32 1.5, %v548
      %v550 = vmul.f32 %v545, %v549
      %vm551 = vweird.f32 %v540
      %vm552 = vweird.f32 %v545
      %vm553 = vmor %vm551, %vm552
      %v554 = vsel %vm553, %v545, %v550
      %v555 = vrsqrt.pop %v543
      %v556 = vmul.f32 %v555, %v543
      %v557 = vmul.f32 %v556, %v555
      %v558 = vmul.f32 0.5, %v557
      %v559 = vsub.f32 1.5, %v558
      %v560 = vmul.f32 %v555, %v559
      %vm561 = vweird.f32 %v543
      %vm562 = vweird.f32 %v555
      %vm563 = vmor %vm561, %vm562
      %v564 = vsel %vm563, %v555, %v560
      %v565 = vmul.f32 %v489, %v554
      %v566 = vmul.f32 %v490, %v564
      %v567 = vperm.slane %v257, 2
      %v568 = vmul.f32 %v565, %v567
      %v569 = vmul.f32 %v566, %v567
      %v570 = vperm.slane %v257, 3
      %v571 = vadd.f32 %v568, %v570
      %v572 = vadd.f32 %v569, %v570
      %573 = vst [vmem:[%s253] sm:$0xff] %v571
      %574 = vst [vmem:[%s253 + $0x8] sm:$0xff] %v572
      %s575 = smul.u32 2, %s17
      %p576 = scmp.lt.s32.totalorder %s575, 7
      %s577 = scalar_select %p576, %s575, 7
      %s578 = smul.addr %s577, 8
      %s579 = scalar_lea.vmem %s6, %s578
      // Predicated region
      $region45: #{normalization_block.1} parent=43 // pred_check
        %p580 = pneg %p166
      $region46: #{normalization_block.1} parent=43 // pred_check_branch
        %582 = sbr.rel (%p580) target = $region48
      $region47: #{normalization_block.1} parent=43 // pred_region
        %s583 = smul.u32 2, %s17
      $region48: #{normalization_block.1} parent=43 // pred_fallthru
        _
    $region44: #{normalization_block.1} parent=5 // pred_fallthru
      _
    %p584 = scmp.le.s32.totalorder 2, %s12
    // Predicated region
    $region49: #{normalization_block.1} parent=5 // pred_check
      %p585 = pneg %p584
    $region50: #{normalization_block.1} parent=5 // pred_check_branch
      %587 = sbr.rel (%p585) target = $region52
    $region51: #{normalization_block.1} parent=5 // pred_region
      %s588 = ssub.s32 %s12, 2
      // Predicated region
      $region53: #{normalization_block.1} parent=51 // pred_check
        %p589 = pneg %p172
      $region54: #{normalization_block.1} parent=51 // pred_check_branch
        %591 = sbr.rel (%p589) target = $region56
      $region55: #{normalization_block.1} parent=51 // pred_region
        %s592 = smul.u32 2, %s18
        %p593 = scmp.lt.s32.totalorder %s592, 7
        %s594 = scalar_select %p593, %s592, 7
        %s595 = smul.addr %s594, 8
        %s596 = scalar_lea.vmem %s6, %s595
      $region56: #{normalization_block.1} parent=51 // pred_fallthru
        _
    $region52: #{normalization_block.1} parent=5 // pred_fallthru
      _
  $region6: #{normalization_block.1} parent=0 // loop_footer
    %s16 = sadd.s32 1, %s12
  $region7: #{normalization_block.1} parent=0 // loop_footer_branch
    %11 = sbr.rel target = $region3
  $region8: #{normalization_block.1} parent=0 // loop_exit
    _

</llo_original>
